<compile_context>
chip_gen: v6e
topology: v6e:2x2x1
jax: 0.10.0
libtpu: 0.0.40
codegen_flags: <defaults>
</compile_context>

<pallas_src>
import functools

import jax
import jax.numpy as jnp
from jax.experimental import pallas as pl
from jax.experimental.pallas import tpu as pltpu


# ----------------------------------------------------------------------------
# Fused kernel: gdep steps of mix-hop propagation + per-hop 1x1-conv accumulate
#   h_0 = x ; h_k = alpha * x + a_scaled @ h_{k-1}     (a_scaled = (1-a)*A_norm)
#   out  = sum_k  h_k @ Wbig_k  + bias
# ----------------------------------------------------------------------------
def mixprop_fused_kernel(x_ref, a_ref, wbig_ref, b_ref, o_ref, acc_ref, *,
                         gdep, alpha, mxu_dtype):
    # x_ref   : (V, nb*C*L)        f32, node-major, batch folded, cols (n, c, l)
    # a_ref   : (V, V)             mxu_dtype, (1-alpha) * row-normalized (adj+I)
    # wbig_ref: (K, nb*CL, nb*OL)  mxu_dtype, block-diag over (n, l) conv weights
    # b_ref   : (1, nb*OL)         f32, bias tiled over (n, l)
    # o_ref   : (V, nb*OL)         cols (n, o, l)
    # acc_ref : (V, nb*OL)         f32 VMEM scratch accumulator
    x = x_ref[...]                               # f32
    a = a_ref[...]                               # mxu_dtype (pre-cast in wrapper)

    # hop 0: h_0 = x.  Its conv contribution seeds the accumulator with ONE
    # wide matmul; the (V, nb*OL) result is lane-dense (no per-batch slicing).
    hm = x.astype(mxu_dtype)                     # MXU operand, reused below
    acc_ref[...] = jnp.dot(hm, wbig_ref[0], preferred_element_type=jnp.float32)

    # Hop-invariant VPU work hoisted out of the loop (stays f32 on the VPU).
    ax = alpha * x

    # hops 1..gdep: one wide (V,V)@(V, nb*CL) propagation matmul + one wide
    # (V, nb*CL)@(nb*CL, nb*OL) conv matmul per hop, accumulated in VMEM.
    for k in range(1, gdep + 1):
        hv = jnp.dot(a, hm, preferred_element_type=jnp.float32)
        h = ax + hv                              # f32 blend on the VPU
        hm = h.astype(mxu_dtype)                 # cast once, reused twice
        acc_ref[...] += jnp.dot(hm, wbig_ref[k],
                                preferred_element_type=jnp.float32)

    # Single full-width (lane-dense) store; bias added exactly once.
    o_ref[...] = (acc_ref[...] + b_ref[...]).astype(o_ref.dtype)


# ----------------------------------------------------------------------------
# Wrapper: one-time precompute (normalized adjacency, restructured conv
# weights, bias tiling) + batch-tile selection + pallas_call.
# ----------------------------------------------------------------------------
def mixprop_forward(x, adj, W, b, *, gdep, alpha, batch_tile=None,
                    mxu_dtype=jnp.float32):
    N, C, V, L = x.shape
    K = gdep + 1
    c_out = W.shape[0]
    CL = C * L
    OL = c_out * L

    # ---- batch-tile selection ----------------------------------------------
    # A tile is valid iff its folded blocks are lane-dense (nb*CL and nb*OL
    # multiples of 128) or it is the whole batch (block == full array dim).
    # Prefer the largest valid tile that still yields >= 2 grid steps
    # (v7x megacore sharding + DMA/compute pipelining); otherwise full batch.
    def _tile_ok(t):
        return t == N or ((t * CL) % 128 == 0 and (t * OL) % 128 == 0)

    if batch_tile is None:
        cands = [d for d in range(1, N // 2 + 1)
                 if N % d == 0 and (d * CL) % 128 == 0 and (d * OL) % 128 == 0]
        nb = max(cands) if cands else N
    else:
        nb = batch_tile
    assert N % nb == 0, "batch_tile must divide N"
    assert _tile_ok(nb), ("batch_tile must make nb*C*L and nb*c_out*L "
                          "multiples of 128 (lane-dense blocks) or equal N")

    # ---- batch-independent precompute (once, outside the grid loop) ---------
    # A_norm = (adj + I) / rowsum(adj + I), pre-scaled by (1 - alpha).
    # Cast to mxu_dtype in the wrapper so bf16 mode also halves the A DMA.
    adj2 = adj + jnp.eye(V, dtype=adj.dtype)
    a_scaled = ((1.0 - alpha) * adj2 / jnp.sum(adj2, axis=1, keepdims=True)
                ).astype(mxu_dtype)

    # Conv weights restructured block-diagonal over (l) and (n):
    #   Wbig[k, n*CL + c*L + l, n'*OL + o*L + l'] = W[o, k*C+c] d(n,n') d(l,l')
    # so each hop's 1x1 conv is one plain 2D matmul on the propagation layout.
    W3 = W.astype(jnp.float32).reshape(c_out, K, C)         # W3[o, k, c]
    w_cl_ol = jnp.einsum('okc,lm->kclom', W3,
                         jnp.eye(L, dtype=jnp.float32)).reshape(K, CL, OL)
    wbig = jnp.einsum('kpq,nm->knpmq', w_cl_ol,
                      jnp.eye(nb, dtype=jnp.float32)
                      ).reshape(K, nb * CL, nb * OL).astype(mxu_dtype)

    # Bias tiled to the output column layout (n, o, l): stays f32 (VPU add).
    b_row = jnp.repeat(b.astype(jnp.float32), L)            # (OL,) cols (o, l)
    b_tiled = jnp.tile(b_row, nb).reshape(1, nb * OL)       # (1, nb*OL)

    # Node-major, batch-folded input layout: (V, N*C*L), columns (n, c, l).
    x_prop = jnp.transpose(x, (2, 0, 1, 3)).reshape(V, N * CL).astype(jnp.float32)

    # ---- VMEM budget (explicit; v7x has 64 MiB physical vs 128 on v5e/v6e) --
    wb = jnp.dtype(mxu_dtype).itemsize
    vmem_est = (2 * V * nb * CL * 4            # x block (double-buffered)
                + 2 * V * nb * OL * 4          # out block (double-buffered)
                + 2 * V * V * wb               # A
                + 2 * K * nb * CL * nb * OL * wb   # conv weights
                + 2 * nb * OL * 4              # bias
                + V * nb * OL * 4              # scratch accumulator
                + 4 * V * nb * CL * 4)         # h / ax / cast temporaries
    vmem_limit = int(min(max(2 * vmem_est, 16 * 2 ** 20), 64 * 2 ** 20))

    grid = (N // nb,)
    out2 = pl.pallas_call(
        functools.partial(mixprop_fused_kernel, gdep=gdep, alpha=float(alpha),
                          mxu_dtype=mxu_dtype),
        out_shape=jax.ShapeDtypeStruct((V, N * OL), jnp.float32),
        grid=grid,
        in_specs=[
            pl.BlockSpec((V, nb * CL), lambda i: (0, i)),
            pl.BlockSpec((V, V), lambda i: (0, 0)),
            pl.BlockSpec((K, nb * CL, nb * OL), lambda i: (0, 0, 0)),
            pl.BlockSpec((1, nb * OL), lambda i: (0, 0)),
        ],
        out_specs=pl.BlockSpec((V, nb * OL), lambda i: (0, i)),
        scratch_shapes=[pltpu.VMEM((V, nb * OL), jnp.float32)],
        # Batch tiles are independent -> "parallel" (megacore-shardable on
        # v7x).  For very large V, additionally tile output rows over V.
        compiler_params=pltpu.CompilerParams(
            dimension_semantics=("parallel",),
            vmem_limit_bytes=vmem_limit),
    )(x_prop, a_scaled, wbig, b_tiled)

    # (V, N*c_out*L) -> (V, N, c_out, L) -> (N, c_out, V, L)
    return jnp.transpose(out2.reshape(V, N, c_out, L), (1, 2, 0, 3))


# ----------------------------------------------------------------------------
# Pure-JAX reference (mirrors the PyTorch forward exactly)
# ----------------------------------------------------------------------------
def mixprop_reference(x, adj, W, b, *, gdep, alpha):
    V = adj.shape[0]
    adj2 = adj + jnp.eye(V, dtype=adj.dtype)
    d = adj2.sum(1)
    a = adj2 / d[:, None]
    h = x
    outs = [h]
    for _ in range(gdep):
        h = alpha * x + (1.0 - alpha) * jnp.einsum("ncwl,vw->ncvl", h, a)
        outs.append(h)
    ho = jnp.concatenate(outs, axis=1)
    return jnp.einsum("oc,ncvl->novl", W, ho) + b[None, :, None, None]


if __name__ == "__main__":
    # Module hyperparameters.  `dropout` is stored by mixprop.__init__ but
    # never applied in forward, so there is nothing to compute for it.
    # TODO(synk): dropout member is unused in the PyTorch forward; not applied.
    N, C_IN, V, L = 2, 4, 16, 8          # batch, channels, nodes, seq
    GDEP, ALPHA, C_OUT = 2, 0.05, 8

    key = jax.random.PRNGKey(0)
    kx, kadj, kw, kb = jax.random.split(key, 4)

    x = jax.random.normal(kx, (N, C_IN, V, L), dtype=jnp.float32)
    adj = jax.random.uniform(kadj, (V, V), dtype=jnp.float32)       # nonneg adjacency
    # Conv2d(c_in=(gdep+1)*C_IN, c_out=C_OUT, kernel=1x1) params
    W = 0.1 * jax.random.normal(kw, (C_OUT, (GDEP + 1) * C_IN), dtype=jnp.float32)
    b = 0.1 * jax.random.normal(kb, (C_OUT,), dtype=jnp.float32)

    # Default mxu_dtype=f32 so the 1e-4 check is bit-for-bit with the math of
    # the reference; pass mxu_dtype=jnp.bfloat16 for v6e/v7x production runs.
    out = mixprop_forward(x, adj, W, b, gdep=GDEP, alpha=ALPHA)
    out = jax.block_until_ready(out)

    ref = mixprop_reference(x, adj, W, b, gdep=GDEP, alpha=ALPHA)
    assert out.shape == (N, C_OUT, V, L)
    assert jnp.allclose(out, ref, rtol=1e-4, atol=1e-4), "mismatch vs reference"

    print("KERNEL_OK")
</pallas_src>

<mosaic_0001>
module attributes {stable_mosaic.version = 11 : i64} {
  func.func @mixprop_fused_kernel(%arg0: i32, %arg1: memref<16x64xf32, #tpu.memory_space<vmem>>, %arg2: memref<16x16xf32, #tpu.memory_space<vmem>>, %arg3: memref<3x64x128xf32, #tpu.memory_space<vmem>>, %arg4: memref<1x128xf32, #tpu.memory_space<vmem>>, %arg5: memref<16x128xf32, #tpu.memory_space<vmem>>, %arg6: memref<16x128xf32, #tpu.memory_space<vmem>>) attributes {dimension_semantics = [#tpu.dimension_semantics<parallel>], iteration_bounds = array<i64: 1>, scalar_prefetch = 0 : i64, scratch_operands = 1 : i64, tpu.core_type = #tpu.core_type<tc>, window_params = [{transform_indices = @transform_0, window_bounds = array<i64: 16, 64>}, {pipeline_mode = #tpu.pipeline_mode<synchronous>, transform_indices = @transform_1, window_bounds = array<i64: 16, 16>}, {pipeline_mode = #tpu.pipeline_mode<synchronous>, transform_indices = @transform_2, window_bounds = array<i64: 3, 64, 128>}, {pipeline_mode = #tpu.pipeline_mode<synchronous>, transform_indices = @transform_3, window_bounds = array<i64: 1, 128>}, {transform_indices = @transform_4, window_bounds = array<i64: 16, 128>}]} {
    %c0 = arith.constant 0 : index
    %c0_0 = arith.constant 0 : index
    %0 = vector.load %arg1[%c0, %c0_0] : memref<16x64xf32, #tpu.memory_space<vmem>>, vector<16x64xf32>
    %c0_1 = arith.constant 0 : index
    %c0_2 = arith.constant 0 : index
    %1 = vector.load %arg2[%c0_1, %c0_2] : memref<16x16xf32, #tpu.memory_space<vmem>>, vector<16x16xf32>
    %c0_3 = arith.constant 0 : index
    %c0_4 = arith.constant 0 : index
    %c0_5 = arith.constant 0 : index
    %2 = vector.load %arg3[%c0_3, %c0_4, %c0_5] : memref<3x64x128xf32, #tpu.memory_space<vmem>>, vector<1x64x128xf32>
    %3 = vector.shape_cast %2 : vector<1x64x128xf32> to vector<64x128xf32>
    %cst = arith.constant dense<0.000000e+00> : vector<16x128xf32>
    %4 = tpu.matmul %0, %3, %cst {dimension_numbers = #tpu.dot_dimension_numbers<[1], [0], [0], [1], [0, 0, 1, 1], [], []>} : vector<16x64xf32>, vector<64x128xf32>, vector<16x128xf32> -> vector<16x128xf32>
    %c0_6 = arith.constant 0 : index
    %c0_7 = arith.constant 0 : index
    %5 = vector.load %arg6[%c0_6, %c0_7] : memref<16x128xf32, #tpu.memory_space<vmem>>, vector<16x128xf32>
    tpu.vector_store %arg6[%c0_6, %c0_7], %4 {strides = array<i32>} : memref<16x128xf32, #tpu.memory_space<vmem>>, vector<16x128xf32>,
    %cst_8 = arith.constant 5.000000e-02 : f32
    %6 = vector.broadcast %cst_8 : f32 to vector<16x64xf32>
    %7 = arith.mulf %6, %0 : vector<16x64xf32>
    %cst_9 = arith.constant dense<0.000000e+00> : vector<16x64xf32>
    %8 = tpu.matmul %1, %0, %cst_9 {dimension_numbers = #tpu.dot_dimension_numbers<[1], [0], [0], [1], [0, 0, 1, 1], [], []>} : vector<16x16xf32>, vector<16x64xf32>, vector<16x64xf32> -> vector<16x64xf32>
    %9 = arith.addf %7, %8 : vector<16x64xf32>
    %c0_10 = arith.constant 0 : index
    %c0_11 = arith.constant 0 : index
    %10 = vector.load %arg6[%c0_10, %c0_11] : memref<16x128xf32, #tpu.memory_space<vmem>>, vector<16x128xf32>
    %c1 = arith.constant 1 : index
    %c0_12 = arith.constant 0 : index
    %c0_13 = arith.constant 0 : index
    %11 = vector.load %arg3[%c1, %c0_12, %c0_13] : memref<3x64x128xf32, #tpu.memory_space<vmem>>, vector<1x64x128xf32>
    %12 = vector.shape_cast %11 : vector<1x64x128xf32> to vector<64x128xf32>
    %cst_14 = arith.constant dense<0.000000e+00> : vector<16x128xf32>
    %13 = tpu.matmul %9, %12, %cst_14 {dimension_numbers = #tpu.dot_dimension_numbers<[1], [0], [0], [1], [0, 0, 1, 1], [], []>} : vector<16x64xf32>, vector<64x128xf32>, vector<16x128xf32> -> vector<16x128xf32>
    %14 = arith.addf %10, %13 : vector<16x128xf32>
    %c0_15 = arith.constant 0 : index
    %c0_16 = arith.constant 0 : index
    %15 = vector.load %arg6[%c0_15, %c0_16] : memref<16x128xf32, #tpu.memory_space<vmem>>, vector<16x128xf32>
    tpu.vector_store %arg6[%c0_15, %c0_16], %14 {strides = array<i32>} : memref<16x128xf32, #tpu.memory_space<vmem>>, vector<16x128xf32>,
    %cst_17 = arith.constant dense<0.000000e+00> : vector<16x64xf32>
    %16 = tpu.matmul %1, %9, %cst_17 {dimension_numbers = #tpu.dot_dimension_numbers<[1], [0], [0], [1], [0, 0, 1, 1], [], []>} : vector<16x16xf32>, vector<16x64xf32>, vector<16x64xf32> -> vector<16x64xf32>
    %17 = arith.addf %7, %16 : vector<16x64xf32>
    %c0_18 = arith.constant 0 : index
    %c0_19 = arith.constant 0 : index
    %18 = vector.load %arg6[%c0_18, %c0_19] : memref<16x128xf32, #tpu.memory_space<vmem>>, vector<16x128xf32>
    %c2 = arith.constant 2 : index
    %c0_20 = arith.constant 0 : index
    %c0_21 = arith.constant 0 : index
    %19 = vector.load %arg3[%c2, %c0_20, %c0_21] : memref<3x64x128xf32, #tpu.memory_space<vmem>>, vector<1x64x128xf32>
    %20 = vector.shape_cast %19 : vector<1x64x128xf32> to vector<64x128xf32>
    %cst_22 = arith.constant dense<0.000000e+00> : vector<16x128xf32>
    %21 = tpu.matmul %17, %20, %cst_22 {dimension_numbers = #tpu.dot_dimension_numbers<[1], [0], [0], [1], [0, 0, 1, 1], [], []>} : vector<16x64xf32>, vector<64x128xf32>, vector<16x128xf32> -> vector<16x128xf32>
    %22 = arith.addf %18, %21 : vector<16x128xf32>
    %c0_23 = arith.constant 0 : index
    %c0_24 = arith.constant 0 : index
    %23 = vector.load %arg6[%c0_23, %c0_24] : memref<16x128xf32, #tpu.memory_space<vmem>>, vector<16x128xf32>
    tpu.vector_store %arg6[%c0_23, %c0_24], %22 {strides = array<i32>} : memref<16x128xf32, #tpu.memory_space<vmem>>, vector<16x128xf32>,
    %c0_25 = arith.constant 0 : index
    %c0_26 = arith.constant 0 : index
    %24 = vector.load %arg6[%c0_25, %c0_26] : memref<16x128xf32, #tpu.memory_space<vmem>>, vector<16x128xf32>
    %c0_27 = arith.constant 0 : index
    %c0_28 = arith.constant 0 : index
    %25 = vector.load %arg4[%c0_27, %c0_28] : memref<1x128xf32, #tpu.memory_space<vmem>>, vector<1x128xf32>
    %26 = vector.broadcast %25 : vector<1x128xf32> to vector<16x128xf32>
    %27 = arith.addf %24, %26 : vector<16x128xf32>
    %c0_29 = arith.constant 0 : index
    %c0_30 = arith.constant 0 : index
    %28 = vector.load %arg5[%c0_29, %c0_30] : memref<16x128xf32, #tpu.memory_space<vmem>>, vector<16x128xf32>
    tpu.vector_store %arg5[%c0_29, %c0_30], %27 {strides = array<i32>} : memref<16x128xf32, #tpu.memory_space<vmem>>, vector<16x128xf32>,
    return
  }
  func.func @transform_0(%arg0: i32) -> (i32, i32) {
    %c0_i32 = arith.constant 0 : i32
    %c0_i32_0 = arith.constant 0 : i32
    return %c0_i32, %arg0 : i32, i32
  }
  func.func @transform_1(%arg0: i32) -> (i32, i32) {
    %c0_i32 = arith.constant 0 : i32
    %c0_i32_0 = arith.constant 0 : i32
    %c0_i32_1 = arith.constant 0 : i32
    return %c0_i32, %c0_i32_0 : i32, i32
  }
  func.func @transform_2(%arg0: i32) -> (i32, i32, i32) {
    %c0_i32 = arith.constant 0 : i32
    %c0_i32_0 = arith.constant 0 : i32
    %c0_i32_1 = arith.constant 0 : i32
    %c0_i32_2 = arith.constant 0 : i32
    return %c0_i32, %c0_i32_0, %c0_i32_1 : i32, i32, i32
  }
  func.func @transform_3(%arg0: i32) -> (i32, i32) {
    %c0_i32 = arith.constant 0 : i32
    %c0_i32_0 = arith.constant 0 : i32
    %c0_i32_1 = arith.constant 0 : i32
    return %c0_i32, %c0_i32_0 : i32, i32
  }
  func.func @transform_4(%arg0: i32) -> (i32, i32) {
    %c0_i32 = arith.constant 0 : i32
    %c0_i32_0 = arith.constant 0 : i32
    return %c0_i32, %arg0 : i32, i32
  }
}

</mosaic_0001>

<llo_original>
// kernel: tpu_custom_call.1
$region0: #{tpu_custom_call.1}
  #allocation0 [shape = 'u32[]', space=smem, size = 0x4, offset = 0x4, fixed_abs, tag = 'smem constant byte address 0x4 - core index']
  #allocation1 [shape = 'u32[144,128]{1,0:T(1,128)}', space=vmem, size = 0x12000, scoped, tag = 'internal scratch']
  #allocation2 [shape = 'f32[16,128]{1,0:T(8,128)}', space=vmem, size = 0x2000, scoped, tag = 'scratch operand']
  %s0 = inlined_call_operand.hbm [shape: f32[16,64], index: 0, kind: input, shape index: {}]
  %s1 = inlined_call_operand.hbm [shape: f32[16,16], index: 1, kind: input, shape index: {}]
  %s2 = inlined_call_operand.hbm [shape: f32[3,64,128], index: 2, kind: input, shape index: {}]
  %s3 = inlined_call_operand.vmem [shape: f32[1,128], index: 3, kind: input, shape index: {}]
  %s4 = inlined_call_operand.hbm [shape: f32[16,128], index: 4, kind: output, shape index: {}]
  %s5 = sld [smem:[#allocation0]]
  $region38: #{tpu_custom_call.1} parent=0
    _
  %s7 = ssub.s32 1, %s5
  %s8 = scalar_select 0, %s7, %s5
  $region1: #{tpu_custom_call.1} parent=0
    #allocation3 [shape = 'u8[8192]{0}', space=vmem, size = 0x2000, scoped, tag = 'input window, operand 0, single buffered']
    #allocation4 [shape = 's32[1]{0}', space=sflag, size = 0x4, scoped, tag = 'scoped memory for tpu_custom_call.1']
    #allocation5 [shape = 's32[1]{0}', space=sflag, size = 0x4, scoped, tag = 'scoped memory for tpu_custom_call.1']
    #allocation6 [shape = 'u8[8192]{0}', space=vmem, size = 0x2000, scoped, tag = 'input window, operand 1, single buffered']
    #allocation7 [shape = 's32[1]{0}', space=sflag, size = 0x4, scoped, tag = 'scoped memory for tpu_custom_call.1']
    #allocation8 [shape = 'u8[98304]{0}', space=vmem, size = 0x18000, scoped, tag = 'input window, operand 2, single buffered']
    #allocation9 [shape = 'u8[8192]{0}', space=vmem, size = 0x2000, scoped, tag = 'output window, operand 0, single buffered']
    %9 = vsyncpa [#allocation4], 0
    %10 = vsyncpa [#allocation7], 0
    %11 = vsyncpa [#allocation5], 0
    // Predicated region
    $region2: #{tpu_custom_call.1} parent=1 // pred_check
      _
    $region3: #{tpu_custom_call.1} parent=1 // pred_check_branch
      %13 = sbr.rel (0) target = $region5
    $region4: #{tpu_custom_call.1} parent=1 // pred_region
      %s15 = ssub.s32 256, 256
      %16 = vsyncadd [#allocation4], %s15
      %s17 = sshll.u32 [#allocation3], 4
      %s18 = int_to_ptr.vmem [resolvable:$true] %s17
      %23 = dma.hbm_to_vmem [thread:$0]  %s0, 256, %s18, [#allocation4], 128, 128, 8
    $region5: #{tpu_custom_call.1} parent=1 // pred_fallthru
      _
    // Predicated region
    $region6: #{tpu_custom_call.1} parent=1 // pred_check
      _
    $region7: #{tpu_custom_call.1} parent=1 // pred_check_branch
      %25 = sbr.rel (0) target = $region9
    $region8: #{tpu_custom_call.1} parent=1 // pred_region
      %s27 = ssub.s32 256, 256
      %28 = vsyncadd [#allocation7], %s27
      %s29 = sshll.u32 [#allocation6], 4
      %s30 = int_to_ptr.vmem [resolvable:$true] %s29
      %35 = dma.hbm_to_vmem [thread:$0]  %s1, 256, %s30, [#allocation7], 128, 128, 8
    $region9: #{tpu_custom_call.1} parent=1 // pred_fallthru
      _
    // Predicated region
    $region10: #{tpu_custom_call.1} parent=1 // pred_check
      _
    $region11: #{tpu_custom_call.1} parent=1 // pred_check_branch
      %37 = sbr.rel (0) target = $region13
    $region12: #{tpu_custom_call.1} parent=1 // pred_region
      %s39 = ssub.s32 3072, 3072
      %40 = vsyncadd [#allocation7], %s39
      %s41 = sshll.u32 [#allocation8], 4
      %s42 = int_to_ptr.vmem [resolvable:$true] %s41
      %47 = dma.hbm_to_vmem [thread:$0]  %s2, 3072, %s42, [#allocation7], 128, 128, 8
    $region13: #{tpu_custom_call.1} parent=1 // pred_fallthru
      _
    // Predicated region
    $region14: #{tpu_custom_call.1} parent=1 // pred_check
      _
    $region15: #{tpu_custom_call.1} parent=1 // pred_check_branch
      %49 = sbr.rel (0) target = $region17
    $region16: #{tpu_custom_call.1} parent=1 // pred_region
      _
    $region17: #{tpu_custom_call.1} parent=1 // pred_fallthru
      _
    // Predicated region
    $region18: #{tpu_custom_call.1} parent=1 // pred_check
      _
    $region19: #{tpu_custom_call.1} parent=1 // pred_check_branch
      %51 = sbr.rel (0) target = $region21
    $region20: #{tpu_custom_call.1} parent=1 // pred_region
      %52 = dma.done [#allocation4], 256
    $region21: #{tpu_custom_call.1} parent=1 // pred_fallthru
      _
    // Predicated region
    $region22: #{tpu_custom_call.1} parent=1 // pred_check
      _
    $region23: #{tpu_custom_call.1} parent=1 // pred_check_branch
      %54 = sbr.rel (0) target = $region25
    $region24: #{tpu_custom_call.1} parent=1 // pred_region
      %55 = dma.done [#allocation7], 256
    $region25: #{tpu_custom_call.1} parent=1 // pred_fallthru
      _
    // Predicated region
    $region26: #{tpu_custom_call.1} parent=1 // pred_check
      _
    $region27: #{tpu_custom_call.1} parent=1 // pred_check_branch
      %57 = sbr.rel (0) target = $region29
    $region28: #{tpu_custom_call.1} parent=1 // pred_region
      %58 = dma.done [#allocation7], 3072
    $region29: #{tpu_custom_call.1} parent=1 // pred_fallthru
      _
    %v59 = vld [vmem:[#allocation3] sm:$0xff]
    %v60 = vld [vmem:[#allocation3 + $0x8] sm:$0xff]
    %v61 = vld [vmem:[#allocation6] sm:$0xff]
    %v62 = vld [vmem:[#allocation6 + $0x8] sm:$0xff]
    %v63 = vld [vmem:[#allocation8] sm:$0xff]
    %v64 = vld [vmem:[#allocation8 + $0x8] sm:$0xff]
    %v65 = vld [vmem:[#allocation8 + $0x10] sm:$0xff]
    %v66 = vld [vmem:[#allocation8 + $0x18] sm:$0xff]
    %v67 = vld [vmem:[#allocation8 + $0x20] sm:$0xff]
    %v68 = vld [vmem:[#allocation8 + $0x28] sm:$0xff]
    %v69 = vld [vmem:[#allocation8 + $0x30] sm:$0xff]
    %v70 = vld [vmem:[#allocation8 + $0x38] sm:$0xff]
    %vm71 = vcmask 523264
    %v73 = vsel %vm71, %v59, 0
    %v76 = vsel %vm71, %v60, 0
    %78 = vmatprep.subr.mxu0 0.0
    %79 = vmatpush1.msra.mxu0 0.0
    %80 = vmatprep.subr.mxu0 0.0
    %81 = vmatpush1.msra.mxu0 0.0
    %82 = vmatprep.subr.mxu0 0.0
    %83 = vmatpush1.msra.mxu0 0.0
    %84 = vmatprep.subr.mxu0 0.0
    %85 = vmatpush1.msra.mxu0 0.0
    %86 = vmatprep.subr.mxu0 0.0
    %87 = vmatpush1.msra.mxu0 0.0
    %88 = vmatprep.subr.mxu0 0.0
    %89 = vmatpush1.msra.mxu0 0.0
    %90 = vmatprep.subr.mxu0 0.0
    %91 = vmatpush1.msra.mxu0 0.0
    %92 = vmatprep.subr.mxu0 0.0
    %93 = vmatpush1.msra.mxu0 0.0
    %94 = vmatprep.subr.mxu0 0.0
    %95 = vmatpush1.msra.mxu0 %v70
    %96 = vmatprep.subr.mxu0 0.0
    %97 = vmatpush1.msra.mxu0 %v69
    %98 = vmatprep.subr.mxu0 0.0
    %99 = vmatpush1.msra.mxu0 %v68
    %100 = vmatprep.subr.mxu0 0.0
    %101 = vmatpush1.msra.mxu0 %v67
    %102 = vmatprep.subr.mxu0 0.0
    %103 = vmatpush1.msra.mxu0 %v66
    %104 = vmatprep.subr.mxu0 0.0
    %105 = vmatpush1.msra.mxu0 %v65
    %106 = vmatprep.subr.mxu0 0.0
    %107 = vmatpush1.msra.mxu0 %v64
    %108 = vmatprep.subr.mxu0 0.0
    %109 = vmatpush1.msra.mxu0 %v63
    %110 = vmatprep.subr.mxu0 0.0
    %111 = vmatpush2.msra.mxu0 0.0
    %112 = vmatprep.subr.mxu0 0.0
    %113 = vmatpush2.msra.mxu0 0.0
    %114 = vmatprep.subr.mxu0 0.0
    %115 = vmatpush2.msra.mxu0 0.0
    %116 = vmatprep.subr.mxu0 0.0
    %117 = vmatpush2.msra.mxu0 0.0
    %118 = vmatprep.subr.mxu0 0.0
    %119 = vmatpush2.msra.mxu0 0.0
    %120 = vmatprep.subr.mxu0 0.0
    %121 = vmatpush2.msra.mxu0 0.0
    %122 = vmatprep.subr.mxu0 0.0
    %123 = vmatpush2.msra.mxu0 0.0
    %124 = vmatprep.subr.mxu0 0.0
    %125 = vmatpush2.msra.mxu0 0.0
    %126 = vmatprep.subr.mxu0 0.0
    %127 = vmatpush2.msra.mxu0 0.0
    %128 = vmatprep.subr.mxu0 0.0
    %129 = vmatpush2.msra.mxu0 0.0
    %130 = vmatprep.subr.mxu0 0.0
    %131 = vmatpush2.msra.mxu0 0.0
    %132 = vmatprep.subr.mxu0 0.0
    %133 = vmatpush2.msra.mxu0 0.0
    %134 = vmatprep.subr.mxu0 0.0
    %135 = vmatpush2.msra.mxu0 0.0
    %136 = vmatprep.subr.mxu0 0.0
    %137 = vmatpush2.msra.mxu0 0.0
    %138 = vmatprep.subr.mxu0 0.0
    %139 = vmatpush2.msra.mxu0 0.0
    %140 = vmatprep.subr.mxu0 0.0
    %141 = vmatpush2.msra.mxu0 0.0
    %142 = vmatprep.mubr.f32.mxu0 0.0
    %143 = vmatmul.mubr.f32.gmra.mxu0 %v73
    %v144 = vpop.f32.mrf.mxu0
    %v145 = vadd.f32 0.0, %v144
    %v146 = vpop.f32.mrf.mxu0
    %147 = vmatprep.mubr.f32.mxu0 0.0
    %148 = vmatmul.mubr.f32.gmra.mxu0 %v76
    %v149 = vpop.f32.mrf.mxu0
    %v150 = vadd.f32 0.0, %v149
    %v151 = vpop.f32.mrf.mxu0
    %152 = vdwg.mxu0
    %153 = vst [vmem:[#allocation2] sm:$0xff] %v145
    %154 = vst [vmem:[#allocation2 + $0x8] sm:$0xff] %v150
    %v155 = vmul.f32 %v59, 0.05
    %v156 = vmul.f32 %v60, 0.05
    %vm157 = vcmask 130048
    %v159 = vsel %vm157, %v61, 0
    %v162 = vsel %vm157, %v62, 0
    %164 = vmatprep.subr.mxu0 0.0
    %165 = vmatpush1.msra.mxu0 0.0
    %166 = vmatprep.subr.mxu0 0.0
    %167 = vmatpush1.msra.mxu0 0.0
    %168 = vmatprep.subr.mxu0 0.0
    %169 = vmatpush1.msra.mxu0 0.0
    %170 = vmatprep.subr.mxu0 0.0
    %171 = vmatpush1.msra.mxu0 0.0
    %172 = vmatprep.subr.mxu0 0.0
    %173 = vmatpush1.msra.mxu0 0.0
    %174 = vmatprep.subr.mxu0 0.0
    %175 = vmatpush1.msra.mxu0 0.0
    %176 = vmatprep.subr.mxu0 0.0
    %177 = vmatpush1.msra.mxu0 0.0
    %178 = vmatprep.subr.mxu0 0.0
    %179 = vmatpush1.msra.mxu0 0.0
    %180 = vmatprep.subr.mxu0 0.0
    %181 = vmatpush1.msra.mxu0 0.0
    %182 = vmatprep.subr.mxu0 0.0
    %183 = vmatpush1.msra.mxu0 0.0
    %184 = vmatprep.subr.mxu0 0.0
    %185 = vmatpush1.msra.mxu0 0.0
    %186 = vmatprep.subr.mxu0 0.0
    %187 = vmatpush1.msra.mxu0 0.0
    %188 = vmatprep.subr.mxu0 0.0
    %189 = vmatpush1.msra.mxu0 0.0
    %190 = vmatprep.subr.mxu0 0.0
    %191 = vmatpush1.msra.mxu0 0.0
    %192 = vmatprep.subr.mxu0 0.0
    %193 = vmatpush1.msra.mxu0 %v60
    %194 = vmatprep.subr.mxu0 0.0
    %195 = vmatpush1.msra.mxu0 %v59
    %196 = vmatprep.subr.mxu0 0.0
    %197 = vmatpush2.msra.mxu0 0.0
    %198 = vmatprep.subr.mxu0 0.0
    %199 = vmatpush2.msra.mxu0 0.0
    %200 = vmatprep.subr.mxu0 0.0
    %201 = vmatpush2.msra.mxu0 0.0
    %202 = vmatprep.subr.mxu0 0.0
    %203 = vmatpush2.msra.mxu0 0.0
    %204 = vmatprep.subr.mxu0 0.0
    %205 = vmatpush2.msra.mxu0 0.0
    %206 = vmatprep.subr.mxu0 0.0
    %207 = vmatpush2.msra.mxu0 0.0
    %208 = vmatprep.subr.mxu0 0.0
    %209 = vmatpush2.msra.mxu0 0.0
    %210 = vmatprep.subr.mxu0 0.0
    %211 = vmatpush2.msra.mxu0 0.0
    %212 = vmatprep.subr.mxu0 0.0
    %213 = vmatpush2.msra.mxu0 0.0
    %214 = vmatprep.subr.mxu0 0.0
    %215 = vmatpush2.msra.mxu0 0.0
    %216 = vmatprep.subr.mxu0 0.0
    %217 = vmatpush2.msra.mxu0 0.0
    %218 = vmatprep.subr.mxu0 0.0
    %219 = vmatpush2.msra.mxu0 0.0
    %220 = vmatprep.subr.mxu0 0.0
    %221 = vmatpush2.msra.mxu0 0.0
    %222 = vmatprep.subr.mxu0 0.0
    %223 = vmatpush2.msra.mxu0 0.0
    %224 = vmatprep.subr.mxu0 0.0
    %225 = vmatpush2.msra.mxu0 0.0
    %226 = vmatprep.subr.mxu0 0.0
    %227 = vmatpush2.msra.mxu0 0.0
    %228 = vmatprep.mubr.f32.mxu0 0.0
    %229 = vmatmul.mubr.f32.gmra.mxu0 %v159
    %v230 = vpop.f32.mrf.mxu0
    %v231 = vadd.f32 0.0, %v230
    %v232 = vpop.f32.mrf.mxu0
    %233 = vmatprep.mubr.f32.mxu0 0.0
    %234 = vmatmul.mubr.f32.gmra.mxu0 %v162
    %v235 = vpop.f32.mrf.mxu0
    %v236 = vadd.f32 0.0, %v235
    %v237 = vpop.f32.mrf.mxu0
    %238 = vdwg.mxu0
    %v239 = vadd.f32 %v155, %v231
    %v240 = vadd.f32 %v156, %v236
    %v241 = vld [vmem:[#allocation2] sm:$0xff]
    %v242 = vld [vmem:[#allocation2 + $0x8] sm:$0xff]
    %s243 = scalar_lea.vmem [#allocation8], 64
    %v244 = vld [vmem:[%s243] sm:$0xff]
    %v245 = vld [vmem:[%s243 + $0x8] sm:$0xff]
    %v246 = vld [vmem:[%s243 + $0x10] sm:$0xff]
    %v247 = vld [vmem:[%s243 + $0x18] sm:$0xff]
    %v248 = vld [vmem:[%s243 + $0x20] sm:$0xff]
    %v249 = vld [vmem:[%s243 + $0x28] sm:$0xff]
    %v250 = vld [vmem:[%s243 + $0x30] sm:$0xff]
    %v251 = vld [vmem:[%s243 + $0x38] sm:$0xff]
    %v253 = vsel %vm71, %v239, 0
    %v256 = vsel %vm71, %v240, 0
    %258 = vmatprep.subr.mxu0 0.0
    %259 = vmatpush1.msra.mxu0 0.0
    %260 = vmatprep.subr.mxu0 0.0
    %261 = vmatpush1.msra.mxu0 0.0
    %262 = vmatprep.subr.mxu0 0.0
    %263 = vmatpush1.msra.mxu0 0.0
    %264 = vmatprep.subr.mxu0 0.0
    %265 = vmatpush1.msra.mxu0 0.0
    %266 = vmatprep.subr.mxu0 0.0
    %267 = vmatpush1.msra.mxu0 0.0
    %268 = vmatprep.subr.mxu0 0.0
    %269 = vmatpush1.msra.mxu0 0.0
    %270 = vmatprep.subr.mxu0 0.0
    %271 = vmatpush1.msra.mxu0 0.0
    %272 = vmatprep.subr.mxu0 0.0
    %273 = vmatpush1.msra.mxu0 0.0
    %274 = vmatprep.subr.mxu0 0.0
    %275 = vmatpush1.msra.mxu0 %v251
    %276 = vmatprep.subr.mxu0 0.0
    %277 = vmatpush1.msra.mxu0 %v250
    %278 = vmatprep.subr.mxu0 0.0
    %279 = vmatpush1.msra.mxu0 %v249
    %280 = vmatprep.subr.mxu0 0.0
    %281 = vmatpush1.msra.mxu0 %v248
    %282 = vmatprep.subr.mxu0 0.0
    %283 = vmatpush1.msra.mxu0 %v247
    %284 = vmatprep.subr.mxu0 0.0
    %285 = vmatpush1.msra.mxu0 %v246
    %286 = vmatprep.subr.mxu0 0.0
    %287 = vmatpush1.msra.mxu0 %v245
    %288 = vmatprep.subr.mxu0 0.0
    %289 = vmatpush1.msra.mxu0 %v244
    %290 = vmatprep.subr.mxu0 0.0
    %291 = vmatpush2.msra.mxu0 0.0
    %292 = vmatprep.subr.mxu0 0.0
    %293 = vmatpush2.msra.mxu0 0.0
    %294 = vmatprep.subr.mxu0 0.0
    %295 = vmatpush2.msra.mxu0 0.0
    %296 = vmatprep.subr.mxu0 0.0
    %297 = vmatpush2.msra.mxu0 0.0
    %298 = vmatprep.subr.mxu0 0.0
    %299 = vmatpush2.msra.mxu0 0.0
    %300 = vmatprep.subr.mxu0 0.0
    %301 = vmatpush2.msra.mxu0 0.0
    %302 = vmatprep.subr.mxu0 0.0
    %303 = vmatpush2.msra.mxu0 0.0
    %304 = vmatprep.subr.mxu0 0.0
    %305 = vmatpush2.msra.mxu0 0.0
    %306 = vmatprep.subr.mxu0 0.0
    %307 = vmatpush2.msra.mxu0 0.0
    %308 = vmatprep.subr.mxu0 0.0
    %309 = vmatpush2.msra.mxu0 0.0
    %310 = vmatprep.subr.mxu0 0.0
    %311 = vmatpush2.msra.mxu0 0.0
    %312 = vmatprep.subr.mxu0 0.0
    %313 = vmatpush2.msra.mxu0 0.0
    %314 = vmatprep.subr.mxu0 0.0
    %315 = vmatpush2.msra.mxu0 0.0
    %316 = vmatprep.subr.mxu0 0.0
    %317 = vmatpush2.msra.mxu0 0.0
    %318 = vmatprep.subr.mxu0 0.0
    %319 = vmatpush2.msra.mxu0 0.0
    %320 = vmatprep.subr.mxu0 0.0
    %321 = vmatpush2.msra.mxu0 0.0
    %322 = vmatprep.mubr.f32.mxu0 0.0
    %323 = vmatmul.mubr.f32.gmra.mxu0 %v253
    %v324 = vpop.f32.mrf.mxu0
    %v325 = vadd.f32 0.0, %v324
    %v326 = vpop.f32.mrf.mxu0
    %327 = vmatprep.mubr.f32.mxu0 0.0
    %328 = vmatmul.mubr.f32.gmra.mxu0 %v256
    %v329 = vpop.f32.mrf.mxu0
    %v330 = vadd.f32 0.0, %v329
    %v331 = vpop.f32.mrf.mxu0
    %332 = vdwg.mxu0
    %v333 = vadd.f32 %v241, %v325
    %v334 = vadd.f32 %v242, %v330
    %335 = vst [vmem:[#allocation2] sm:$0xff] %v333
    %336 = vst [vmem:[#allocation2 + $0x8] sm:$0xff] %v334
    %337 = vmatprep.subr.mxu0 0.0
    %338 = vmatpush1.msra.mxu0 0.0
    %339 = vmatprep.subr.mxu0 0.0
    %340 = vmatpush1.msra.mxu0 0.0
    %341 = vmatprep.subr.mxu0 0.0
    %342 = vmatpush1.msra.mxu0 0.0
    %343 = vmatprep.subr.mxu0 0.0
    %344 = vmatpush1.msra.mxu0 0.0
    %345 = vmatprep.subr.mxu0 0.0
    %346 = vmatpush1.msra.mxu0 0.0
    %347 = vmatprep.subr.mxu0 0.0
    %348 = vmatpush1.msra.mxu0 0.0
    %349 = vmatprep.subr.mxu0 0.0
    %350 = vmatpush1.msra.mxu0 0.0
    %351 = vmatprep.subr.mxu0 0.0
    %352 = vmatpush1.msra.mxu0 0.0
    %353 = vmatprep.subr.mxu0 0.0
    %354 = vmatpush1.msra.mxu0 0.0
    %355 = vmatprep.subr.mxu0 0.0
    %356 = vmatpush1.msra.mxu0 0.0
    %357 = vmatprep.subr.mxu0 0.0
    %358 = vmatpush1.msra.mxu0 0.0
    %359 = vmatprep.subr.mxu0 0.0
    %360 = vmatpush1.msra.mxu0 0.0
    %361 = vmatprep.subr.mxu0 0.0
    %362 = vmatpush1.msra.mxu0 0.0
    %363 = vmatprep.subr.mxu0 0.0
    %364 = vmatpush1.msra.mxu0 0.0
    %365 = vmatprep.subr.mxu0 0.0
    %366 = vmatpush1.msra.mxu0 %v240
    %367 = vmatprep.subr.mxu0 0.0
    %368 = vmatpush1.msra.mxu0 %v239
    %369 = vmatprep.subr.mxu0 0.0
    %370 = vmatpush2.msra.mxu0 0.0
    %371 = vmatprep.subr.mxu0 0.0
    %372 = vmatpush2.msra.mxu0 0.0
    %373 = vmatprep.subr.mxu0 0.0
    %374 = vmatpush2.msra.mxu0 0.0
    %375 = vmatprep.subr.mxu0 0.0
    %376 = vmatpush2.msra.mxu0 0.0
    %377 = vmatprep.subr.mxu0 0.0
    %378 = vmatpush2.msra.mxu0 0.0
    %379 = vmatprep.subr.mxu0 0.0
    %380 = vmatpush2.msra.mxu0 0.0
    %381 = vmatprep.subr.mxu0 0.0
    %382 = vmatpush2.msra.mxu0 0.0
    %383 = vmatprep.subr.mxu0 0.0
    %384 = vmatpush2.msra.mxu0 0.0
    %385 = vmatprep.subr.mxu0 0.0
    %386 = vmatpush2.msra.mxu0 0.0
    %387 = vmatprep.subr.mxu0 0.0
    %388 = vmatpush2.msra.mxu0 0.0
    %389 = vmatprep.subr.mxu0 0.0
    %390 = vmatpush2.msra.mxu0 0.0
    %391 = vmatprep.subr.mxu0 0.0
    %392 = vmatpush2.msra.mxu0 0.0
    %393 = vmatprep.subr.mxu0 0.0
    %394 = vmatpush2.msra.mxu0 0.0
    %395 = vmatprep.subr.mxu0 0.0
    %396 = vmatpush2.msra.mxu0 0.0
    %397 = vmatprep.subr.mxu0 0.0
    %398 = vmatpush2.msra.mxu0 0.0
    %399 = vmatprep.subr.mxu0 0.0
    %400 = vmatpush2.msra.mxu0 0.0
    %401 = vmatprep.mubr.f32.mxu0 0.0
    %402 = vmatmul.mubr.f32.gmra.mxu0 %v159
    %v403 = vpop.f32.mrf.mxu0
    %v404 = vadd.f32 0.0, %v403
    %v405 = vpop.f32.mrf.mxu0
    %406 = vmatprep.mubr.f32.mxu0 0.0
    %407 = vmatmul.mubr.f32.gmra.mxu0 %v162
    %v408 = vpop.f32.mrf.mxu0
    %v409 = vadd.f32 0.0, %v408
    %v410 = vpop.f32.mrf.mxu0
    %411 = vdwg.mxu0
    %v412 = vadd.f32 %v155, %v404
    %v413 = vadd.f32 %v156, %v409
    %v414 = vld [vmem:[#allocation2] sm:$0xff]
    %v415 = vld [vmem:[#allocation2 + $0x8] sm:$0xff]
    %s416 = scalar_lea.vmem [#allocation8], 128
    %v417 = vld [vmem:[%s416] sm:$0xff]
    %v418 = vld [vmem:[%s416 + $0x8] sm:$0xff]
    %v419 = vld [vmem:[%s416 + $0x10] sm:$0xff]
    %v420 = vld [vmem:[%s416 + $0x18] sm:$0xff]
    %v421 = vld [vmem:[%s416 + $0x20] sm:$0xff]
    %v422 = vld [vmem:[%s416 + $0x28] sm:$0xff]
    %v423 = vld [vmem:[%s416 + $0x30] sm:$0xff]
    %v424 = vld [vmem:[%s416 + $0x38] sm:$0xff]
    %v426 = vsel %vm71, %v412, 0
    %v429 = vsel %vm71, %v413, 0
    %431 = vmatprep.subr.mxu0 0.0
    %432 = vmatpush1.msra.mxu0 0.0
    %433 = vmatprep.subr.mxu0 0.0
    %434 = vmatpush1.msra.mxu0 0.0
    %435 = vmatprep.subr.mxu0 0.0
    %436 = vmatpush1.msra.mxu0 0.0
    %437 = vmatprep.subr.mxu0 0.0
    %438 = vmatpush1.msra.mxu0 0.0
    %439 = vmatprep.subr.mxu0 0.0
    %440 = vmatpush1.msra.mxu0 0.0
    %441 = vmatprep.subr.mxu0 0.0
    %442 = vmatpush1.msra.mxu0 0.0
    %443 = vmatprep.subr.mxu0 0.0
    %444 = vmatpush1.msra.mxu0 0.0
    %445 = vmatprep.subr.mxu0 0.0
    %446 = vmatpush1.msra.mxu0 0.0
    %447 = vmatprep.subr.mxu0 0.0
    %448 = vmatpush1.msra.mxu0 %v424
    %449 = vmatprep.subr.mxu0 0.0
    %450 = vmatpush1.msra.mxu0 %v423
    %451 = vmatprep.subr.mxu0 0.0
    %452 = vmatpush1.msra.mxu0 %v422
    %453 = vmatprep.subr.mxu0 0.0
    %454 = vmatpush1.msra.mxu0 %v421
    %455 = vmatprep.subr.mxu0 0.0
    %456 = vmatpush1.msra.mxu0 %v420
    %457 = vmatprep.subr.mxu0 0.0
    %458 = vmatpush1.msra.mxu0 %v419
    %459 = vmatprep.subr.mxu0 0.0
    %460 = vmatpush1.msra.mxu0 %v418
    %461 = vmatprep.subr.mxu0 0.0
    %462 = vmatpush1.msra.mxu0 %v417
    %463 = vmatprep.subr.mxu0 0.0
    %464 = vmatpush2.msra.mxu0 0.0
    %465 = vmatprep.subr.mxu0 0.0
    %466 = vmatpush2.msra.mxu0 0.0
    %467 = vmatprep.subr.mxu0 0.0
    %468 = vmatpush2.msra.mxu0 0.0
    %469 = vmatprep.subr.mxu0 0.0
    %470 = vmatpush2.msra.mxu0 0.0
    %471 = vmatprep.subr.mxu0 0.0
    %472 = vmatpush2.msra.mxu0 0.0
    %473 = vmatprep.subr.mxu0 0.0
    %474 = vmatpush2.msra.mxu0 0.0
    %475 = vmatprep.subr.mxu0 0.0
    %476 = vmatpush2.msra.mxu0 0.0
    %477 = vmatprep.subr.mxu0 0.0
    %478 = vmatpush2.msra.mxu0 0.0
    %479 = vmatprep.subr.mxu0 0.0
    %480 = vmatpush2.msra.mxu0 0.0
    %481 = vmatprep.subr.mxu0 0.0
    %482 = vmatpush2.msra.mxu0 0.0
    %483 = vmatprep.subr.mxu0 0.0
    %484 = vmatpush2.msra.mxu0 0.0
    %485 = vmatprep.subr.mxu0 0.0
    %486 = vmatpush2.msra.mxu0 0.0
    %487 = vmatprep.subr.mxu0 0.0
    %488 = vmatpush2.msra.mxu0 0.0
    %489 = vmatprep.subr.mxu0 0.0
    %490 = vmatpush2.msra.mxu0 0.0
    %491 = vmatprep.subr.mxu0 0.0
    %492 = vmatpush2.msra.mxu0 0.0
    %493 = vmatprep.subr.mxu0 0.0
    %494 = vmatpush2.msra.mxu0 0.0
    %495 = vmatprep.mubr.f32.mxu0 0.0
    %496 = vmatmul.mubr.f32.gmra.mxu0 %v426
    %v497 = vpop.f32.mrf.mxu0
    %v498 = vadd.f32 0.0, %v497
    %v499 = vpop.f32.mrf.mxu0
    %500 = vmatprep.mubr.f32.mxu0 0.0
    %501 = vmatmul.mubr.f32.gmra.mxu0 %v429
    %v502 = vpop.f32.mrf.mxu0
    %v503 = vadd.f32 0.0, %v502
    %v504 = vpop.f32.mrf.mxu0
    %505 = vdwg.mxu0
    %v506 = vadd.f32 %v414, %v498
    %v507 = vadd.f32 %v415, %v503
    %508 = vst [vmem:[#allocation2] sm:$0xff] %v506
    %509 = vst [vmem:[#allocation2 + $0x8] sm:$0xff] %v507
    %v510 = vld [vmem:[#allocation2] sm:$0xff]
    %v511 = vld [vmem:[#allocation2 + $0x8] sm:$0xff]
    %v512 = vld [vmem:[%s3] sm:$0x1]
    %v514 = vlaneseq
    %v515 = vshrl.u32 %v514, 7
    %v516 = vsub.s32 0, %v515
    %v517 = vrot.slane %v512, %v516
    %v519 = vadd.f32 %v510, %v517
    %v520 = vadd.f32 %v511, %v517
    %521 = vst [vmem:[#allocation9] sm:$0xff] %v519
    %522 = vst [vmem:[#allocation9 + $0x8] sm:$0xff] %v520
    // Predicated region
    $region30: #{tpu_custom_call.1} parent=1 // pred_check
      _
    $region31: #{tpu_custom_call.1} parent=1 // pred_check_branch
      %524 = sbr.rel (0) target = $region33
    $region32: #{tpu_custom_call.1} parent=1 // pred_region
      %s526 = ssub.s32 256, 256
      %527 = vsyncadd [#allocation5], %s526
      %s528 = sshll.u32 [#allocation9], 4
      %s529 = int_to_ptr.vmem [resolvable:$true] %s528
      %534 = dma.vmem_to_hbm [thread:$0]  %s529, 256, %s4, [#allocation5], 128, 128, 8
    $region33: #{tpu_custom_call.1} parent=1 // pred_fallthru
      _
    // Predicated region
    $region34: #{tpu_custom_call.1} parent=1 // pred_check
      _
    $region35: #{tpu_custom_call.1} parent=1 // pred_check_branch
      %536 = sbr.rel (0) target = $region37
    $region36: #{tpu_custom_call.1} parent=1 // pred_region
      %537 = dma.done [#allocation5], 256
    $region37: #{tpu_custom_call.1} parent=1 // pred_fallthru
      _
    %538 = vsyncpa [#allocation4], 1
    %539 = vsyncpa [#allocation7], 1
    %540 = vsyncpa [#allocation5], 1

</llo_original>
